<compile_context>
chip_gen: v5e
topology: v5e:2x2
jax: 0.10.0
libtpu: 0.0.40
codegen_flags: <defaults>
</compile_context>

<pallas_src>
import functools

import jax
import jax.numpy as jnp
from jax.experimental import pallas as pl
from jax.experimental.pallas import tpu as pltpu

EPS = 1e-5
LANES = 128


def _round_up(x, m):
    return (x + m - 1) // m * m


# ---------------------------------------------------------------------------
# Fused kernel.  Grid = (phase, batch-tile); phase is the outer (slow) axis.
#   stats_ref rows: 0 = sum(z1), 1 = sum(z1^2), 2 = sum(z2), 3 = sum(z2^2).
# ---------------------------------------------------------------------------
def fused_kernel(x_ref, w1_ref, pv_ref, w2_ref, w3_ref, o_ref,
                 z1_buf, z2_buf, stats_ref, *, batch, tile):
    phase = pl.program_id(0)
    i = pl.program_id(1)
    row0 = pl.multiple_of(i * tile, tile)
    inv_b = 1.0 / float(batch)   # true batch size (static), not padded row count

    @pl.when(jnp.logical_and(phase == 0, i == 0))
    def _init():
        stats_ref[...] = jnp.zeros_like(stats_ref)

    @pl.when(phase == 0)
    def _phase0():
        # z1 = x @ W1 (bf16 MXU, f32 accumulate).  b1 is elided: a constant added
        # before train-mode BN cancels exactly when the batch mean is subtracted.
        z1 = jnp.dot(x_ref[...], w1_ref[...], preferred_element_type=jnp.float32)
        stats_ref[0:1, :] = stats_ref[0:1, :] + jnp.sum(z1, axis=0, keepdims=True)
        stats_ref[1:2, :] = stats_ref[1:2, :] + jnp.sum(z1 * z1, axis=0, keepdims=True)
        z1_buf[pl.ds(row0, tile), :] = z1.astype(z1_buf.dtype)

    @pl.when(phase == 1)
    def _phase1():
        pv = pv_ref[...]
        g1, be1 = pv[0:1, :], pv[1:2, :]
        mu1 = stats_ref[0:1, :] * inv_b
        var1 = jnp.maximum(stats_ref[1:2, :] * inv_b - mu1 * mu1, 0.0)
        z1 = z1_buf[pl.ds(row0, tile), :].astype(jnp.float32)
        h1 = jnp.maximum((z1 - mu1) * jax.lax.rsqrt(var1 + EPS) * g1 + be1, 0.0)
        # Zero-padded batch rows had z1 == 0, but BN shifts them off zero; mask
        # them so they cannot contaminate the layer-2 batch statistics.
        rows = jax.lax.broadcasted_iota(jnp.int32, h1.shape, 0) + row0
        h1 = jnp.where(rows < batch, h1, 0.0)
        z2 = jnp.dot(h1, w2_ref[...], preferred_element_type=jnp.float32)
        stats_ref[2:3, :] = stats_ref[2:3, :] + jnp.sum(z2, axis=0, keepdims=True)
        stats_ref[3:4, :] = stats_ref[3:4, :] + jnp.sum(z2 * z2, axis=0, keepdims=True)
        z2_buf[pl.ds(row0, tile), :] = z2.astype(z2_buf.dtype)

    @pl.when(phase == 2)
    def _phase2():
        pv = pv_ref[...]
        g2, be2, b3 = pv[2:3, :], pv[3:4, :], pv[4:5, :]
        mu2 = stats_ref[2:3, :] * inv_b
        var2 = jnp.maximum(stats_ref[3:4, :] * inv_b - mu2 * mu2, 0.0)
        z2 = z2_buf[pl.ds(row0, tile), :].astype(jnp.float32)
        h2 = jnp.maximum((z2 - mu2) * jax.lax.rsqrt(var2 + EPS) * g2 + be2, 0.0)
        # Lane-padded (128-wide) unmasked full-lane store; wrapper slices [:, :10].
        o_ref[...] = jnp.dot(h2, w3_ref[...], preferred_element_type=jnp.float32) + b3


def pack_params(p):
    """bf16 lane-padded W1 (streams with the bf16 x), f32 lane-padded W2/W3, and
    all small per-feature vectors packed into a single (8, 128) array (one DMA).
    b1/b2 are intentionally absent: constants added before train-mode BN are
    cancelled by the batch-mean subtraction."""
    w1p = jnp.zeros((784, LANES), jnp.float32).at[:, :48].set(p["w1"]).astype(jnp.bfloat16)
    w2p = jnp.zeros((LANES, LANES), jnp.float32).at[:48, :24].set(p["w2"])
    w3p = jnp.zeros((LANES, LANES), jnp.float32).at[:24, :10].set(p["w3"])
    pv = jnp.zeros((8, LANES), jnp.float32)
    pv = pv.at[0, :48].set(p["g1"].reshape(-1))
    pv = pv.at[1, :48].set(p["be1"].reshape(-1))
    pv = pv.at[2, :24].set(p["g2"].reshape(-1))
    pv = pv.at[3, :24].set(p["be2"].reshape(-1))
    pv = pv.at[4, :10].set(p["b3"].reshape(-1))
    return w1p, w2p, w3p, pv


def bnnet_forward(x, params, *, batch_tile=1024):
    """x: (B, ...) flattened to (B, 784), as x.view(x.size(0), -1) does."""
    x = x.reshape(x.shape[0], -1).astype(jnp.float32)
    B, F = x.shape

    # Batch-tile geometry (multiples of 16 keep bf16 sublane packing aligned).
    if B <= batch_tile:
        TB = _round_up(max(B, 16), 16)
        Bp = TB
    else:
        TB = _round_up(batch_tile, 16)
        Bp = _round_up(B, TB)
    num_tiles = Bp // TB

    xp = x if Bp == B else jnp.pad(x, ((0, Bp - B), (0, 0)))
    # bf16 x stream: the kernel is HBM-bound on x, so this halves the dominant
    # traffic; the MXU still accumulates in f32 (preferred_element_type below).
    xp = xp.astype(jnp.bfloat16)

    w1p, w2p, w3p, pv = pack_params(params)

    grid_spec = pltpu.PrefetchScalarGridSpec(
        num_scalar_prefetch=0,
        grid=(3, num_tiles),               # (phase, batch tile); phase outer
        in_specs=[
            # x is only read in phase 0: pin its block index afterwards so the
            # stream is not re-fetched in phases 1/2 (>= 1 redundant tile max).
            pl.BlockSpec((TB, F), lambda p, i: (jnp.where(p == 0, i, 0), 0)),
            # Resident (constant-index) weights / packed per-feature vectors.
            pl.BlockSpec((F, LANES), lambda p, i: (0, 0)),
            pl.BlockSpec((8, LANES), lambda p, i: (0, 0)),
            pl.BlockSpec((LANES, LANES), lambda p, i: (0, 0)),
            pl.BlockSpec((LANES, LANES), lambda p, i: (0, 0)),
        ],
        # Output is only produced in phase 2; keep its block index pinned before
        # that so no early write-back happens (flash-attention-style finalize).
        out_specs=pl.BlockSpec((TB, LANES), lambda p, i: (jnp.where(p == 2, i, 0), 0)),
        scratch_shapes=[
            pltpu.VMEM((Bp, LANES), jnp.bfloat16),   # z1: stays in VMEM, no HBM trip
            pltpu.VMEM((Bp, LANES), jnp.bfloat16),   # z2: stays in VMEM, no HBM trip
            pltpu.VMEM((4, LANES), jnp.float32),     # sum / sumsq accumulators
        ],
    )

    # VMEM footprint: double-buffered bf16 x tiles + resident weights + f32 out
    # tiles + persistent bf16 z1/z2 scratch.  Only raise the scoped limit when
    # the persistent scratch pushes past the smallest default (v5e: 16 MiB).
    vmem_need = (2 * TB * F * 2 + F * LANES * 2 * 2 + 2 * LANES * LANES * 4 * 2
                 + 2 * 8 * LANES * 4 + 2 * TB * LANES * 4 + 2 * Bp * LANES * 2
                 + (1 << 20))
    cp = dict(dimension_semantics=("arbitrary", "arbitrary"))
    if vmem_need > 12 * 2**20:
        # TODO(synk): batches beyond ~50k rows exceed even the raised limit on
        # v7x (64 MiB physical VMEM); those need a batch-tiled two-pass stage 2
        # (z2 HBM round-trip) with megacore-'parallel' per-tile stats instead.
        cp["vmem_limit_bytes"] = int(min(max(vmem_need, 32 * 2**20), 56 * 2**20))

    out_pad = pl.pallas_call(
        functools.partial(fused_kernel, batch=B, tile=TB),
        out_shape=jax.ShapeDtypeStruct((Bp, LANES), jnp.float32),
        grid_spec=grid_spec,
        compiler_params=pltpu.CompilerParams(**cp),
    )(xp, w1p, pv, w2p, w3p)

    return out_pad[:B, :10]


def init_params(key):
    """Deterministic, PyTorch-like (uniform +/- 1/sqrt(fan_in)) initialization.
    b1/b2 are kept here for fidelity to the torch module / reference, even though
    the kernel provably does not need them."""
    def linear(key, fan_in, fan_out):
        kw, kb = jax.random.split(key)
        bound = 1.0 / (fan_in ** 0.5)
        w = jax.random.uniform(kw, (fan_in, fan_out), jnp.float32, -bound, bound)
        b = jax.random.uniform(kb, (1, fan_out), jnp.float32, -bound, bound)
        return w, b

    k1, k2, k3 = jax.random.split(key, 3)
    w1, b1 = linear(k1, 784, 48)
    w2, b2 = linear(k2, 48, 24)
    w3, b3 = linear(k3, 24, 10)
    return {
        "w1": w1, "b1": b1,
        "g1": jnp.ones((1, 48), jnp.float32), "be1": jnp.zeros((1, 48), jnp.float32),
        "w2": w2, "b2": b2,
        "g2": jnp.ones((1, 24), jnp.float32), "be2": jnp.zeros((1, 24), jnp.float32),
        "w3": w3, "b3": b3,
    }


def reference_forward(x, p):
    """Pure-JAX f32 reference matching the PyTorch module exactly (biases included)."""
    def bn_relu(h, g, b):
        mu = jnp.mean(h, axis=0, keepdims=True)
        var = jnp.mean((h - mu) ** 2, axis=0, keepdims=True)
        return jnp.maximum((h - mu) / jnp.sqrt(var + EPS) * g + b, 0.0)

    h1 = bn_relu(x @ p["w1"] + p["b1"], p["g1"], p["be1"])
    h2 = bn_relu(h1 @ p["w2"] + p["b2"], p["g2"], p["be2"])
    return h2 @ p["w3"] + p["b3"]


if __name__ == "__main__":
    key = jax.random.PRNGKey(0)
    kx, kp = jax.random.split(key)

    B = 8
    # Input images (B, 1, 28, 28); the forward flattens them like x.view(x.size(0), -1).
    x_img = jax.random.normal(kx, (B, 1, 28, 28), jnp.float32)

    params = init_params(kp)

    out = jax.block_until_ready(bnnet_forward(x_img, params))
    ref = reference_forward(x_img.reshape(B, -1), params)

    assert out.shape == (B, 10)
    # Tolerance relaxed vs the all-f32 version: x/W1 stream in bf16 and z1/z2 are
    # held in bf16 VMEM scratch (expected |err| ~1e-2 on O(0.1-1) logits).
    assert jnp.allclose(out, ref, atol=3e-2, rtol=3e-2), "Pallas output mismatch vs JAX reference"

    print("KERNEL_OK")
</pallas_src>

<mosaic_0001>
module attributes {stable_mosaic.version = 11 : i64} {
  func.func @fused_kernel(%arg0: i32, %arg1: i32, %arg2: memref<16x784xbf16, #tpu.memory_space<vmem>>, %arg3: memref<784x128xbf16, #tpu.memory_space<vmem>>, %arg4: memref<8x128xf32, #tpu.memory_space<vmem>>, %arg5: memref<128x128xf32, #tpu.memory_space<vmem>>, %arg6: memref<128x128xf32, #tpu.memory_space<vmem>>, %arg7: memref<16x128xf32, #tpu.memory_space<vmem>>, %arg8: memref<16x128xbf16, #tpu.memory_space<vmem>>, %arg9: memref<16x128xbf16, #tpu.memory_space<vmem>>, %arg10: memref<4x128xf32, #tpu.memory_space<vmem>>) attributes {dimension_semantics = [#tpu.dimension_semantics<arbitrary>, #tpu.dimension_semantics<arbitrary>], iteration_bounds = array<i64: 3, 1>, scalar_prefetch = 0 : i64, scratch_operands = 3 : i64, tpu.core_type = #tpu.core_type<tc>, window_params = [{transform_indices = @transform_0, window_bounds = array<i64: 16, 784>}, {pipeline_mode = #tpu.pipeline_mode<synchronous>, transform_indices = @transform_1, window_bounds = array<i64: 784, 128>}, {pipeline_mode = #tpu.pipeline_mode<synchronous>, transform_indices = @transform_2, window_bounds = array<i64: 8, 128>}, {pipeline_mode = #tpu.pipeline_mode<synchronous>, transform_indices = @transform_3, window_bounds = array<i64: 128, 128>}, {pipeline_mode = #tpu.pipeline_mode<synchronous>, transform_indices = @transform_4, window_bounds = array<i64: 128, 128>}, {transform_indices = @transform_5, window_bounds = array<i64: 16, 128>}]} {
    %c16_i32 = arith.constant 16 : i32
    %0 = arith.muli %arg1, %c16_i32 : i32
    %1 = tpu.assume_multiple %0, 16 : i32
    %c0_i32 = arith.constant 0 : i32
    %2 = arith.cmpi eq, %arg0, %c0_i32 : i32
    %c0_i32_0 = arith.constant 0 : i32
    %3 = arith.cmpi eq, %arg1, %c0_i32_0 : i32
    %4 = arith.andi %2, %3 : i1
    %5 = arith.extui %4 : i1 to i32
    %c0_i32_1 = arith.constant 0 : i32
    %6 = arith.cmpi ne, %5, %c0_i32_1 : i32
    scf.if %6 {
      %cst = arith.constant 0.000000e+00 : f32
      %16 = vector.broadcast %cst : f32 to vector<4x128xf32>
      %c0 = arith.constant 0 : index
      %c0_6 = arith.constant 0 : index
      %17 = vector.load %arg10[%c0, %c0_6] : memref<4x128xf32, #tpu.memory_space<vmem>>, vector<4x128xf32>
      tpu.vector_store %arg10[%c0, %c0_6], %16 {strides = array<i32>} : memref<4x128xf32, #tpu.memory_space<vmem>>, vector<4x128xf32>,
    } else {
    }
    %c0_i32_2 = arith.constant 0 : i32
    %7 = arith.cmpi eq, %arg0, %c0_i32_2 : i32
    %8 = arith.extui %7 : i1 to i32
    %c0_i32_3 = arith.constant 0 : i32
    %9 = arith.cmpi ne, %8, %c0_i32_3 : i32
    scf.if %9 {
      %c0 = arith.constant 0 : index
      %c0_6 = arith.constant 0 : index
      %16 = vector.load %arg2[%c0, %c0_6] : memref<16x784xbf16, #tpu.memory_space<vmem>>, vector<16x784xbf16>
      %c0_7 = arith.constant 0 : index
      %c0_8 = arith.constant 0 : index
      %17 = vector.load %arg3[%c0_7, %c0_8] : memref<784x128xbf16, #tpu.memory_space<vmem>>, vector<784x128xbf16>
      %cst = arith.constant dense<0.000000e+00> : vector<16x128xf32>
      %18 = tpu.matmul %16, %17, %cst {dimension_numbers = #tpu.dot_dimension_numbers<[1], [0], [0], [1], [0, 0, 1, 1], [], []>} : vector<16x784xbf16>, vector<784x128xbf16>, vector<16x128xf32> -> vector<16x128xf32>
      %c0_9 = arith.constant 0 : index
      %c0_10 = arith.constant 0 : index
      %19 = vector.load %arg10[%c0_9, %c0_10] : memref<4x128xf32, #tpu.memory_space<vmem>>, vector<1x128xf32>
      %cst_11 = arith.constant dense<0.000000e+00> : vector<128xf32>
      %20 = vector.multi_reduction <add>, %18, %cst_11 [0] : vector<16x128xf32> to vector<128xf32>
      %21 = vector.shape_cast %20 : vector<128xf32> to vector<1x128xf32>
      %22 = arith.addf %19, %21 : vector<1x128xf32>
      %c0_12 = arith.constant 0 : index
      %c0_13 = arith.constant 0 : index
      %23 = vector.load %arg10[%c0_12, %c0_13] : memref<4x128xf32, #tpu.memory_space<vmem>>, vector<1x128xf32>
      tpu.vector_store %arg10[%c0_12, %c0_13], %22 {strides = array<i32>} : memref<4x128xf32, #tpu.memory_space<vmem>>, vector<1x128xf32>,
      %c1 = arith.constant 1 : index
      %c0_14 = arith.constant 0 : index
      %24 = vector.load %arg10[%c1, %c0_14] : memref<4x128xf32, #tpu.memory_space<vmem>>, vector<1x128xf32>
      %25 = arith.mulf %18, %18 : vector<16x128xf32>
      %cst_15 = arith.constant dense<0.000000e+00> : vector<128xf32>
      %26 = vector.multi_reduction <add>, %25, %cst_15 [0] : vector<16x128xf32> to vector<128xf32>
      %27 = vector.shape_cast %26 : vector<128xf32> to vector<1x128xf32>
      %28 = arith.addf %24, %27 : vector<1x128xf32>
      %c1_16 = arith.constant 1 : index
      %c0_17 = arith.constant 0 : index
      %29 = vector.load %arg10[%c1_16, %c0_17] : memref<4x128xf32, #tpu.memory_space<vmem>>, vector<1x128xf32>
      tpu.vector_store %arg10[%c1_16, %c0_17], %28 {strides = array<i32>} : memref<4x128xf32, #tpu.memory_space<vmem>>, vector<1x128xf32>,
      %30 = arith.truncf %18 : vector<16x128xf32> to vector<16x128xbf16>
      %31 = arith.index_cast %1 : i32 to index
      %c0_18 = arith.constant 0 : index
      %32 = vector.load %arg8[%31, %c0_18] : memref<16x128xbf16, #tpu.memory_space<vmem>>, vector<16x128xbf16>
      tpu.vector_store %arg8[%31, %c0_18], %30 {strides = array<i32>} : memref<16x128xbf16, #tpu.memory_space<vmem>>, vector<16x128xbf16>,
    } else {
    }
    %c1_i32 = arith.constant 1 : i32
    %10 = arith.cmpi eq, %arg0, %c1_i32 : i32
    %11 = arith.extui %10 : i1 to i32
    %c0_i32_4 = arith.constant 0 : i32
    %12 = arith.cmpi ne, %11, %c0_i32_4 : i32
    scf.if %12 {
      %c0 = arith.constant 0 : index
      %c0_6 = arith.constant 0 : index
      %16 = vector.load %arg4[%c0, %c0_6] : memref<8x128xf32, #tpu.memory_space<vmem>>, vector<8x128xf32>
      %17 = vector.extract_strided_slice %16 {offsets = [0, 0], sizes = [1, 128], strides = [1, 1]} : vector<8x128xf32> to vector<1x128xf32>
      %18 = vector.extract_strided_slice %16 {offsets = [1, 0], sizes = [1, 128], strides = [1, 1]} : vector<8x128xf32> to vector<1x128xf32>
      %c0_7 = arith.constant 0 : index
      %c0_8 = arith.constant 0 : index
      %19 = vector.load %arg10[%c0_7, %c0_8] : memref<4x128xf32, #tpu.memory_space<vmem>>, vector<1x128xf32>
      %cst = arith.constant 1.250000e-01 : f32
      %20 = vector.broadcast %cst : f32 to vector<1x128xf32>
      %21 = arith.mulf %19, %20 : vector<1x128xf32>
      %c1 = arith.constant 1 : index
      %c0_9 = arith.constant 0 : index
      %22 = vector.load %arg10[%c1, %c0_9] : memref<4x128xf32, #tpu.memory_space<vmem>>, vector<1x128xf32>
      %cst_10 = arith.constant 1.250000e-01 : f32
      %23 = vector.broadcast %cst_10 : f32 to vector<1x128xf32>
      %24 = arith.mulf %22, %23 : vector<1x128xf32>
      %25 = arith.mulf %21, %21 : vector<1x128xf32>
      %26 = arith.subf %24, %25 : vector<1x128xf32>
      %cst_11 = arith.constant 0.000000e+00 : f32
      %27 = vector.broadcast %cst_11 : f32 to vector<1x128xf32>
      %28 = arith.maximumf %26, %27 : vector<1x128xf32>
      %29 = arith.index_cast %1 : i32 to index
      %c0_12 = arith.constant 0 : index
      %30 = vector.load %arg8[%29, %c0_12] : memref<16x128xbf16, #tpu.memory_space<vmem>>, vector<16x128xbf16>
      %31 = arith.extf %30 : vector<16x128xbf16> to vector<16x128xf32>
      %32 = vector.broadcast %21 : vector<1x128xf32> to vector<16x128xf32>
      %33 = arith.subf %31, %32 : vector<16x128xf32>
      %cst_13 = arith.constant 9.99999974E-6 : f32
      %34 = vector.broadcast %cst_13 : f32 to vector<1x128xf32>
      %35 = arith.addf %28, %34 : vector<1x128xf32>
      %36 = math.rsqrt %35 : vector<1x128xf32>
      %37 = vector.broadcast %36 : vector<1x128xf32> to vector<16x128xf32>
      %38 = arith.mulf %33, %37 : vector<16x128xf32>
      %39 = vector.broadcast %17 : vector<1x128xf32> to vector<16x128xf32>
      %40 = arith.mulf %38, %39 : vector<16x128xf32>
      %41 = vector.broadcast %18 : vector<1x128xf32> to vector<16x128xf32>
      %42 = arith.addf %40, %41 : vector<16x128xf32>
      %cst_14 = arith.constant 0.000000e+00 : f32
      %43 = vector.broadcast %cst_14 : f32 to vector<16x128xf32>
      %44 = arith.maximumf %42, %43 : vector<16x128xf32>
      %45 = tpu.iota {dimensions = array<i32: 0>} : vector<16x128xi32>
      %46 = vector.broadcast %1 : i32 to vector<16x128xi32>
      %47 = arith.addi %45, %46 : vector<16x128xi32>
      %c8_i32 = arith.constant 8 : i32
      %48 = vector.broadcast %c8_i32 : i32 to vector<16x128xi32>
      %49 = arith.cmpi slt, %47, %48 : vector<16x128xi32>
      %cst_15 = arith.constant 0.000000e+00 : f32
      %50 = vector.broadcast %cst_15 : f32 to vector<16x128xf32>
      %51 = arith.select %49, %44, %50 : vector<16x128xi1>, vector<16x128xf32>
      %c0_16 = arith.constant 0 : index
      %c0_17 = arith.constant 0 : index
      %52 = vector.load %arg5[%c0_16, %c0_17] : memref<128x128xf32, #tpu.memory_space<vmem>>, vector<128x128xf32>
      %cst_18 = arith.constant dense<0.000000e+00> : vector<16x128xf32>
      %53 = tpu.matmul %51, %52, %cst_18 {dimension_numbers = #tpu.dot_dimension_numbers<[1], [0], [0], [1], [0, 0, 1, 1], [], []>} : vector<16x128xf32>, vector<128x128xf32>, vector<16x128xf32> -> vector<16x128xf32>
      %c2 = arith.constant 2 : index
      %c0_19 = arith.constant 0 : index
      %54 = vector.load %arg10[%c2, %c0_19] : memref<4x128xf32, #tpu.memory_space<vmem>>, vector<1x128xf32>
      %cst_20 = arith.constant dense<0.000000e+00> : vector<128xf32>
      %55 = vector.multi_reduction <add>, %53, %cst_20 [0] : vector<16x128xf32> to vector<128xf32>
      %56 = vector.shape_cast %55 : vector<128xf32> to vector<1x128xf32>
      %57 = arith.addf %54, %56 : vector<1x128xf32>
      %c2_21 = arith.constant 2 : index
      %c0_22 = arith.constant 0 : index
      %58 = vector.load %arg10[%c2_21, %c0_22] : memref<4x128xf32, #tpu.memory_space<vmem>>, vector<1x128xf32>
      tpu.vector_store %arg10[%c2_21, %c0_22], %57 {strides = array<i32>} : memref<4x128xf32, #tpu.memory_space<vmem>>, vector<1x128xf32>,
      %c3 = arith.constant 3 : index
      %c0_23 = arith.constant 0 : index
      %59 = vector.load %arg10[%c3, %c0_23] : memref<4x128xf32, #tpu.memory_space<vmem>>, vector<1x128xf32>
      %60 = arith.mulf %53, %53 : vector<16x128xf32>
      %cst_24 = arith.constant dense<0.000000e+00> : vector<128xf32>
      %61 = vector.multi_reduction <add>, %60, %cst_24 [0] : vector<16x128xf32> to vector<128xf32>
      %62 = vector.shape_cast %61 : vector<128xf32> to vector<1x128xf32>
      %63 = arith.addf %59, %62 : vector<1x128xf32>
      %c3_25 = arith.constant 3 : index
      %c0_26 = arith.constant 0 : index
      %64 = vector.load %arg10[%c3_25, %c0_26] : memref<4x128xf32, #tpu.memory_space<vmem>>, vector<1x128xf32>
      tpu.vector_store %arg10[%c3_25, %c0_26], %63 {strides = array<i32>} : memref<4x128xf32, #tpu.memory_space<vmem>>, vector<1x128xf32>,
      %65 = arith.truncf %53 : vector<16x128xf32> to vector<16x128xbf16>
      %66 = arith.index_cast %1 : i32 to index
      %c0_27 = arith.constant 0 : index
      %67 = vector.load %arg9[%66, %c0_27] : memref<16x128xbf16, #tpu.memory_space<vmem>>, vector<16x128xbf16>
      tpu.vector_store %arg9[%66, %c0_27], %65 {strides = array<i32>} : memref<16x128xbf16, #tpu.memory_space<vmem>>, vector<16x128xbf16>,
    } else {
    }
    %c2_i32 = arith.constant 2 : i32
    %13 = arith.cmpi eq, %arg0, %c2_i32 : i32
    %14 = arith.extui %13 : i1 to i32
    %c0_i32_5 = arith.constant 0 : i32
    %15 = arith.cmpi ne, %14, %c0_i32_5 : i32
    scf.if %15 {
      %c0 = arith.constant 0 : index
      %c0_6 = arith.constant 0 : index
      %16 = vector.load %arg4[%c0, %c0_6] : memref<8x128xf32, #tpu.memory_space<vmem>>, vector<8x128xf32>
      %17 = vector.extract_strided_slice %16 {offsets = [2, 0], sizes = [1, 128], strides = [1, 1]} : vector<8x128xf32> to vector<1x128xf32>
      %18 = vector.extract_strided_slice %16 {offsets = [3, 0], sizes = [1, 128], strides = [1, 1]} : vector<8x128xf32> to vector<1x128xf32>
      %19 = vector.extract_strided_slice %16 {offsets = [4, 0], sizes = [1, 128], strides = [1, 1]} : vector<8x128xf32> to vector<1x128xf32>
      %c2 = arith.constant 2 : index
      %c0_7 = arith.constant 0 : index
      %20 = vector.load %arg10[%c2, %c0_7] : memref<4x128xf32, #tpu.memory_space<vmem>>, vector<1x128xf32>
      %cst = arith.constant 1.250000e-01 : f32
      %21 = vector.broadcast %cst : f32 to vector<1x128xf32>
      %22 = arith.mulf %20, %21 : vector<1x128xf32>
      %c3 = arith.constant 3 : index
      %c0_8 = arith.constant 0 : index
      %23 = vector.load %arg10[%c3, %c0_8] : memref<4x128xf32, #tpu.memory_space<vmem>>, vector<1x128xf32>
      %cst_9 = arith.constant 1.250000e-01 : f32
      %24 = vector.broadcast %cst_9 : f32 to vector<1x128xf32>
      %25 = arith.mulf %23, %24 : vector<1x128xf32>
      %26 = arith.mulf %22, %22 : vector<1x128xf32>
      %27 = arith.subf %25, %26 : vector<1x128xf32>
      %cst_10 = arith.constant 0.000000e+00 : f32
      %28 = vector.broadcast %cst_10 : f32 to vector<1x128xf32>
      %29 = arith.maximumf %27, %28 : vector<1x128xf32>
      %30 = arith.index_cast %1 : i32 to index
      %c0_11 = arith.constant 0 : index
      %31 = vector.load %arg9[%30, %c0_11] : memref<16x128xbf16, #tpu.memory_space<vmem>>, vector<16x128xbf16>
      %32 = arith.extf %31 : vector<16x128xbf16> to vector<16x128xf32>
      %33 = vector.broadcast %22 : vector<1x128xf32> to vector<16x128xf32>
      %34 = arith.subf %32, %33 : vector<16x128xf32>
      %cst_12 = arith.constant 9.99999974E-6 : f32
      %35 = vector.broadcast %cst_12 : f32 to vector<1x128xf32>
      %36 = arith.addf %29, %35 : vector<1x128xf32>
      %37 = math.rsqrt %36 : vector<1x128xf32>
      %38 = vector.broadcast %37 : vector<1x128xf32> to vector<16x128xf32>
      %39 = arith.mulf %34, %38 : vector<16x128xf32>
      %40 = vector.broadcast %17 : vector<1x128xf32> to vector<16x128xf32>
      %41 = arith.mulf %39, %40 : vector<16x128xf32>
      %42 = vector.broadcast %18 : vector<1x128xf32> to vector<16x128xf32>
      %43 = arith.addf %41, %42 : vector<16x128xf32>
      %cst_13 = arith.constant 0.000000e+00 : f32
      %44 = vector.broadcast %cst_13 : f32 to vector<16x128xf32>
      %45 = arith.maximumf %43, %44 : vector<16x128xf32>
      %c0_14 = arith.constant 0 : index
      %c0_15 = arith.constant 0 : index
      %46 = vector.load %arg6[%c0_14, %c0_15] : memref<128x128xf32, #tpu.memory_space<vmem>>, vector<128x128xf32>
      %cst_16 = arith.constant dense<0.000000e+00> : vector<16x128xf32>
      %47 = tpu.matmul %45, %46, %cst_16 {dimension_numbers = #tpu.dot_dimension_numbers<[1], [0], [0], [1], [0, 0, 1, 1], [], []>} : vector<16x128xf32>, vector<128x128xf32>, vector<16x128xf32> -> vector<16x128xf32>
      %48 = vector.broadcast %19 : vector<1x128xf32> to vector<16x128xf32>
      %49 = arith.addf %47, %48 : vector<16x128xf32>
      %c0_17 = arith.constant 0 : index
      %c0_18 = arith.constant 0 : index
      %50 = vector.load %arg7[%c0_17, %c0_18] : memref<16x128xf32, #tpu.memory_space<vmem>>, vector<16x128xf32>
      tpu.vector_store %arg7[%c0_17, %c0_18], %49 {strides = array<i32>} : memref<16x128xf32, #tpu.memory_space<vmem>>, vector<16x128xf32>,
    } else {
    }
    return
  }
  func.func @transform_0(%arg0: i32, %arg1: i32) -> (i32, i32) {
    %c0_i32 = arith.constant 0 : i32
    %0 = arith.cmpi eq, %arg0, %c0_i32 : i32
    %c0_i32_0 = arith.constant 0 : i32
    %1 = arith.select %0, %arg1, %c0_i32_0 : i32
    %c0_i32_1 = arith.constant 0 : i32
    %c0_i32_2 = arith.constant 0 : i32
    return %1, %c0_i32_1 : i32, i32
  }
  func.func @transform_1(%arg0: i32, %arg1: i32) -> (i32, i32) {
    %c0_i32 = arith.constant 0 : i32
    %c0_i32_0 = arith.constant 0 : i32
    %c0_i32_1 = arith.constant 0 : i32
    return %c0_i32, %c0_i32_0 : i32, i32
  }
  func.func @transform_2(%arg0: i32, %arg1: i32) -> (i32, i32) {
    %c0_i32 = arith.constant 0 : i32
    %c0_i32_0 = arith.constant 0 : i32
    %c0_i32_1 = arith.constant 0 : i32
    return %c0_i32, %c0_i32_0 : i32, i32
  }
  func.func @transform_3(%arg0: i32, %arg1: i32) -> (i32, i32) {
    %c0_i32 = arith.constant 0 : i32
    %c0_i32_0 = arith.constant 0 : i32
    %c0_i32_1 = arith.constant 0 : i32
    return %c0_i32, %c0_i32_0 : i32, i32
  }
  func.func @transform_4(%arg0: i32, %arg1: i32) -> (i32, i32) {
    %c0_i32 = arith.constant 0 : i32
    %c0_i32_0 = arith.constant 0 : i32
    %c0_i32_1 = arith.constant 0 : i32
    return %c0_i32, %c0_i32_0 : i32, i32
  }
  func.func @transform_5(%arg0: i32, %arg1: i32) -> (i32, i32) {
    %c2_i32 = arith.constant 2 : i32
    %0 = arith.cmpi eq, %arg0, %c2_i32 : i32
    %c0_i32 = arith.constant 0 : i32
    %1 = arith.select %0, %arg1, %c0_i32 : i32
    %c0_i32_0 = arith.constant 0 : i32
    %c0_i32_1 = arith.constant 0 : i32
    return %1, %c0_i32_0 : i32, i32
  }
}

</mosaic_0001>

<llo_original>
// kernel: tpu_custom_call.1
$region0: #{tpu_custom_call.1}
  #allocation0 [shape = 'u32[]', space=smem, size = 0x4, offset = 0x4, fixed_abs, tag = 'smem constant byte address 0x4 - core index']
  #allocation1 [shape = 'u32[72,128]{1,0:T(1,128)}', space=vmem, size = 0x9000, scoped, tag = 'internal scratch']
  #allocation2 [shape = 'bf16[16,128]{1,0:T(8,128)(2,1)}', space=vmem, size = 0x1000, scoped, tag = 'scratch operand']
  #allocation3 [shape = 'bf16[16,128]{1,0:T(8,128)(2,1)}', space=vmem, size = 0x1000, scoped, tag = 'scratch operand']
  #allocation4 [shape = 'f32[4,128]{1,0:T(4,128)}', space=vmem, size = 0x800, scoped, tag = 'scratch operand']
  %s0 = inlined_call_operand.hbm [shape: bf16[16,784], index: 0, kind: input, shape index: {}]
  %s1 = inlined_call_operand.hbm [shape: bf16[784,128], index: 1, kind: input, shape index: {}]
  %s2 = inlined_call_operand.hbm [shape: f32[8,128], index: 2, kind: input, shape index: {}]
  %s3 = inlined_call_operand.hbm [shape: f32[128,128], index: 3, kind: input, shape index: {}]
  %s4 = inlined_call_operand.hbm [shape: f32[128,128], index: 4, kind: input, shape index: {}]
  %s5 = inlined_call_operand.hbm [shape: f32[16,128], index: 5, kind: output, shape index: {}]
  %s6 = sld [smem:[#allocation0]]
  $region89: #{tpu_custom_call.1} parent=0
    _
  %s8 = ssub.s32 1, %s6
  %s9 = scalar_select 0, %s8, %s6
  $region1: #{tpu_custom_call.1} parent=0
    #allocation5 [shape = 'u8[57344]{0}', space=vmem, size = 0xe000, scoped, tag = 'input window, operand 0']
    #allocation6 [shape = 's32[2]{0}', space=sflag, size = 0x8, scoped, tag = 'scoped memory for tpu_custom_call.1']
    #allocation7 [shape = 's32[2]{0}', space=sflag, size = 0x8, scoped, tag = 'scoped memory for tpu_custom_call.1']
    #allocation8 [shape = 'u8[200704]{0}', space=vmem, size = 0x31000, scoped, tag = 'input window, operand 1, single buffered']
    #allocation9 [shape = 's32[1]{0}', space=sflag, size = 0x4, scoped, tag = 'scoped memory for tpu_custom_call.1']
    #allocation10 [shape = 'u8[4096]{0}', space=vmem, size = 0x1000, scoped, tag = 'input window, operand 2, single buffered']
    #allocation11 [shape = 'u8[65536]{0}', space=vmem, size = 0x10000, scoped, tag = 'input window, operand 3, single buffered']
    #allocation12 [shape = 's32[1]{0}', space=sflag, size = 0x4, scoped, tag = 'scoped memory for tpu_custom_call.1']
    #allocation13 [shape = 'u8[65536]{0}', space=vmem, size = 0x10000, scoped, tag = 'input window, operand 4, single buffered']
    #allocation14 [shape = 'u8[16384]{0}', space=vmem, size = 0x4000, scoped, tag = 'output window, operand 0']
    %10 = vsyncpa [#allocation6], 0
    %s11 = scalar_lea.sflag [#allocation6], 1
    %12 = vsyncpa %s11, 0
    %13 = vsyncpa [#allocation9], 0
    %14 = vsyncpa [#allocation12], 0
    %15 = vsyncpa [#allocation7], 0
    %s16 = scalar_lea.sflag [#allocation7], 1
    %17 = vsyncpa %s16, 0
    loop: start=0, step=1, limit=5
    $region2: #{tpu_custom_call.1} parent=1 // loop_pre_header
      _
    $region3: #{tpu_custom_call.1} parent=1 // loop_header
      %s19 = sphi 0, %s23
      %p20 = scmp.ge.s32.totalorder %s19, 5
      %s26 = sphi 0, %s38
      %s27 = sphi 0, %s34
      %s28 = sphi 0, %s26
      %s29 = sphi 0, %s27
      %s30 = sphi 0, %s28
      %s31 = sphi 0, %s29
      %s45 = sphi 0, %s47
      %s48 = sphi 0, %s45
      %s49 = sphi 0, %s48
      %s65 = sphi 0, %s49
      %s69 = sphi 0, %s69
      %s71 = sphi 0, %s69
      %s72 = sphi 0, %s71
      %s86 = sphi 0, %s72
      %s90 = sphi 0, %s90
      %s92 = sphi 0, %s90
      %s93 = sphi 0, %s92
      %s107 = sphi 0, %s93
      %s111 = sphi 0, %s111
      %s113 = sphi 0, %s111
      %s114 = sphi 0, %s113
      %s128 = sphi 0, %s114
      %s132 = sphi 0, %s132
      %s134 = sphi 0, %s132
      %s135 = sphi 0, %s134
      %s149 = sphi 0, %s135
      %s159 = sphi 0, %s161
      %s162 = sphi 0, %s159
      %s163 = sphi 0, %s162
      %s179 = sphi 0, %s163
    $region4: #{tpu_custom_call.1} parent=1 // loop_header_branch
      %22 = sbr.rel (%p20) target = $region8
    $region5: #{tpu_custom_call.1} parent=1 // loop_body
      %s24 = ssub.s32 %s19, 1
      %s25 = ssub.s32 %s19, 2
      %s32 = sadd.s32 1, %s27
      %p33 = scmp.ge.s32.totalorder %s32, 1
      %s34 = scalar_select %p33, 0, %s32
      %s35 = sadd.s32 1, %s26
      %s36 = scalar_select %p33, %s35, %s26
      %p37 = scmp.ge.s32.totalorder %s36, 3
      %s38 = scalar_select %p37, 0, %s36
      %p39 = scmp.eq.s32.totalorder %s26, 0
      %s40 = scalar_select %p39, %s27, 0
      %p41 = scmp.eq.s32.totalorder %s38, 0
      %s42 = scalar_select %p41, %s34, 0
      %s43 = ssub.s32 %s40, %s42
      %p44 = scmp.eq.s32.totalorder %s43, 0
      %s46 = sadd.s32 %s45, 1
      %s47 = scalar_select %p44, %s45, %s46
      %p50 = pneg %p44
      %p51 = scmp.eq.s32.totalorder %s19, 2
      %p52 = por %p50, %p51
      %p53 = scmp.ne.s32.totalorder %s45, %s48
      %p54 = scmp.eq.s32.totalorder %s19, 0
      %p55 = por %p53, %p54
      %p56 = scmp.ne.s32.totalorder %s45, %s48
      %p57 = scmp.eq.s32.totalorder %s24, 2
      %p58 = por %p56, %p57
      %p59 = scmp.ne.s32.totalorder %s48, %s49
      %p60 = scmp.eq.s32.totalorder %s24, 0
      %p61 = por %p59, %p60
      %p62 = scmp.ne.s32.totalorder %s48, %s49
      %p63 = scmp.eq.s32.totalorder %s25, 2
      %p64 = por %p62, %p63
      %p66 = scmp.ne.s32.totalorder %s49, %s65
      %p67 = scmp.eq.s32.totalorder %s25, 0
      %p68 = por %p66, %p67
      %s70 = sadd.s32 %s69, 1
      %p73 = scmp.eq.s32.totalorder %s19, 2
      %p74 = scmp.ne.s32.totalorder %s69, %s71
      %p75 = scmp.eq.s32.totalorder %s19, 0
      %p76 = por %p74, %p75
      %p77 = scmp.ne.s32.totalorder %s69, %s71
      %p78 = scmp.eq.s32.totalorder %s24, 2
      %p79 = por %p77, %p78
      %p80 = scmp.ne.s32.totalorder %s71, %s72
      %p81 = scmp.eq.s32.totalorder %s24, 0
      %p82 = por %p80, %p81
      %p83 = scmp.ne.s32.totalorder %s71, %s72
      %p84 = scmp.eq.s32.totalorder %s25, 2
      %p85 = por %p83, %p84
      %p87 = scmp.ne.s32.totalorder %s72, %s86
      %p88 = scmp.eq.s32.totalorder %s25, 0
      %p89 = por %p87, %p88
      %s91 = sadd.s32 %s90, 1
      %p94 = scmp.eq.s32.totalorder %s19, 2
      %p95 = scmp.ne.s32.totalorder %s90, %s92
      %p96 = scmp.eq.s32.totalorder %s19, 0
      %p97 = por %p95, %p96
      %p98 = scmp.ne.s32.totalorder %s90, %s92
      %p99 = scmp.eq.s32.totalorder %s24, 2
      %p100 = por %p98, %p99
      %p101 = scmp.ne.s32.totalorder %s92, %s93
      %p102 = scmp.eq.s32.totalorder %s24, 0
      %p103 = por %p101, %p102
      %p104 = scmp.ne.s32.totalorder %s92, %s93
      %p105 = scmp.eq.s32.totalorder %s25, 2
      %p106 = por %p104, %p105
      %p108 = scmp.ne.s32.totalorder %s93, %s107
      %p109 = scmp.eq.s32.totalorder %s25, 0
      %p110 = por %p108, %p109
      %s112 = sadd.s32 %s111, 1
      %p115 = scmp.eq.s32.totalorder %s19, 2
      %p116 = scmp.ne.s32.totalorder %s111, %s113
      %p117 = scmp.eq.s32.totalorder %s19, 0
      %p118 = por %p116, %p117
      %p119 = scmp.ne.s32.totalorder %s111, %s113
      %p120 = scmp.eq.s32.totalorder %s24, 2
      %p121 = por %p119, %p120
      %p122 = scmp.ne.s32.totalorder %s113, %s114
      %p123 = scmp.eq.s32.totalorder %s24, 0
      %p124 = por %p122, %p123
      %p125 = scmp.ne.s32.totalorder %s113, %s114
      %p126 = scmp.eq.s32.totalorder %s25, 2
      %p127 = por %p125, %p126
      %p129 = scmp.ne.s32.totalorder %s114, %s128
      %p130 = scmp.eq.s32.totalorder %s25, 0
      %p131 = por %p129, %p130
      %s133 = sadd.s32 %s132, 1
      %p136 = scmp.eq.s32.totalorder %s19, 2
      %p137 = scmp.ne.s32.totalorder %s132, %s134
      %p138 = scmp.eq.s32.totalorder %s19, 0
      %p139 = por %p137, %p138
      %p140 = scmp.ne.s32.totalorder %s132, %s134
      %p141 = scmp.eq.s32.totalorder %s24, 2
      %p142 = por %p140, %p141
      %p143 = scmp.ne.s32.totalorder %s134, %s135
      %p144 = scmp.eq.s32.totalorder %s24, 0
      %p145 = por %p143, %p144
      %p146 = scmp.ne.s32.totalorder %s134, %s135
      %p147 = scmp.eq.s32.totalorder %s25, 2
      %p148 = por %p146, %p147
      %p150 = scmp.ne.s32.totalorder %s135, %s149
      %p151 = scmp.eq.s32.totalorder %s25, 0
      %p152 = por %p150, %p151
      %p153 = scmp.eq.s32.totalorder %s26, 2
      %s154 = scalar_select %p153, %s27, 0
      %p155 = scmp.eq.s32.totalorder %s38, 2
      %s156 = scalar_select %p155, %s34, 0
      %s157 = ssub.s32 %s154, %s156
      %p158 = scmp.eq.s32.totalorder %s157, 0
      %s160 = sadd.s32 %s159, 1
      %s161 = scalar_select %p158, %s159, %s160
      %p164 = pneg %p158
      %p165 = scmp.eq.s32.totalorder %s19, 2
      %p166 = por %p164, %p165
      %p167 = scmp.ne.s32.totalorder %s159, %s162
      %p168 = scmp.eq.s32.totalorder %s19, 0
      %p169 = por %p167, %p168
      %p170 = scmp.ne.s32.totalorder %s159, %s162
      %p171 = scmp.eq.s32.totalorder %s24, 2
      %p172 = por %p170, %p171
      %p173 = scmp.ne.s32.totalorder %s162, %s163
      %p174 = scmp.eq.s32.totalorder %s24, 0
      %p175 = por %p173, %p174
      %p176 = scmp.ne.s32.totalorder %s162, %s163
      %p177 = scmp.eq.s32.totalorder %s25, 2
      %p178 = por %p176, %p177
      %p180 = scmp.ne.s32.totalorder %s163, %s179
      %p181 = scmp.eq.s32.totalorder %s25, 0
      %p182 = por %p180, %p181
      %p183 = scmp.le.s32.totalorder 1, %s19
      %p184 = scmp.lt.s32.totalorder %s19, 4
      %p185 = pnand %p183, %p184
      %p186 = pneg %p185
      // Predicated region
      $region9: #{tpu_custom_call.1} parent=5 // pred_check
        _
      $region10: #{tpu_custom_call.1} parent=5 // pred_check_branch
        %188 = sbr.rel (%p185) target = $region12
      $region11: #{tpu_custom_call.1} parent=5 // pred_region
        %s189 = ssub.s32 %s19, 1
        // Predicated region
        $region13: #{tpu_custom_call.1} parent=11 // pred_check
          %p190 = pneg %p82
        $region14: #{tpu_custom_call.1} parent=11 // pred_check_branch
          %192 = sbr.rel (%p190) target = $region16
        $region15: #{tpu_custom_call.1} parent=11 // pred_region
          %194 = vsyncadd [#allocation9], 0
          %s195 = sshll.u32 %s1, 4
          %s196 = int_to_ptr.hbm [resolvable:$true] %s195
          %s197 = sshll.u32 [#allocation8], 4
          %s198 = int_to_ptr.vmem [resolvable:$true] %s197
          %203 = dma.hbm_to_vmem [thread:$0]  %s196, 6272, %s198, [#allocation9], 64, 64, 4
        $region16: #{tpu_custom_call.1} parent=11 // pred_fallthru
          _
        // Predicated region
        $region17: #{tpu_custom_call.1} parent=11 // pred_check
          %p204 = pneg %p103
        $region18: #{tpu_custom_call.1} parent=11 // pred_check_branch
          %206 = sbr.rel (%p204) target = $region20
        $region19: #{tpu_custom_call.1} parent=11 // pred_region
          %208 = vsyncadd [#allocation9], 0
          %s210 = sshll.u32 %s2, 4
          %s211 = int_to_ptr.hbm [resolvable:$true] %s210
          %s212 = sshll.u32 [#allocation10], 4
          %s213 = int_to_ptr.vmem [resolvable:$true] %s212
          %215 = dma.hbm_to_vmem [thread:$0]  %s211, 128, %s213, [#allocation9]
        $region20: #{tpu_custom_call.1} parent=11 // pred_fallthru
          _
        // Predicated region
        $region21: #{tpu_custom_call.1} parent=11 // pred_check
          %p216 = pneg %p124
        $region22: #{tpu_custom_call.1} parent=11 // pred_check_branch
          %218 = sbr.rel (%p216) target = $region24
        $region23: #{tpu_custom_call.1} parent=11 // pred_region
          %220 = vsyncadd [#allocation12], 0
          %s221 = sshll.u32 %s3, 4
          %s222 = int_to_ptr.hbm [resolvable:$true] %s221
          %s223 = sshll.u32 [#allocation11], 4
          %s224 = int_to_ptr.vmem [resolvable:$true] %s223
          %229 = dma.hbm_to_vmem [thread:$0]  %s222, 2048, %s224, [#allocation12], 128, 128, 8
        $region24: #{tpu_custom_call.1} parent=11 // pred_fallthru
          _
        // Predicated region
        $region25: #{tpu_custom_call.1} parent=11 // pred_check
          %p230 = pneg %p145
        $region26: #{tpu_custom_call.1} parent=11 // pred_check_branch
          %232 = sbr.rel (%p230) target = $region28
        $region27: #{tpu_custom_call.1} parent=11 // pred_region
          %234 = vsyncadd [#allocation12], 0
          %s235 = sshll.u32 %s4, 4
          %s236 = int_to_ptr.hbm [resolvable:$true] %s235
          %s237 = sshll.u32 [#allocation13], 4
          %s238 = int_to_ptr.vmem [resolvable:$true] %s237
          %243 = dma.hbm_to_vmem [thread:$0]  %s236, 2048, %s238, [#allocation12], 128, 128, 8
        $region28: #{tpu_custom_call.1} parent=11 // pred_fallthru
          _
      $region12: #{tpu_custom_call.1} parent=5 // pred_fallthru
        _
      %p244 = scmp.lt.s32.totalorder %s19, 3
      // Predicated region
      $region29: #{tpu_custom_call.1} parent=5 // pred_check
        %p245 = pneg %p244
      $region30: #{tpu_custom_call.1} parent=5 // pred_check_branch
        %247 = sbr.rel (%p245) target = $region32
      $region31: #{tpu_custom_call.1} parent=5 // pred_region
        // Predicated region
        $region33: #{tpu_custom_call.1} parent=31 // pred_check
          %p248 = pneg %p55
        $region34: #{tpu_custom_call.1} parent=31 // pred_check_branch
          %250 = sbr.rel (%p248) target = $region36
        $region35: #{tpu_custom_call.1} parent=31 // pred_region
          %s251 = sand.u32 %s45, 1
          %s252 = scalar_lea.sflag [#allocation6], %s251
          %s253 = sand.u32 %s45, 1
          %s254 = smul.addr %s253, 56
          %s255 = scalar_lea.vmem [#allocation5], %s254
          %p256 = scmp.eq.s32.totalorder %s26, 0
          %s257 = scalar_select %p256, %s27, 0
          %s258 = smul.u32 2, %s257
          %260 = vsyncadd %s252, 0
          %s261 = smul.addr %s258, 7
          %s262 = smul.addr %s261, 4
          %s263 = scalar_lea.hbm %s0, %s262
          %s264 = sshll.u32 %s263, 4
          %s265 = int_to_ptr.hbm [resolvable:$true] %s264
          %s266 = sshll.u32 %s255, 4
          %s267 = int_to_ptr.vmem [resolvable:$true] %s266
          %272 = dma.hbm_to_vmem [thread:$0]  %s265, 896, %s267, %s252, 448, 448, 28
        $region36: #{tpu_custom_call.1} parent=31 // pred_fallthru
          _
      $region32: #{tpu_custom_call.1} parent=5 // pred_fallthru
        _
      %p273 = scmp.le.s32.totalorder 1, %s19
      %p274 = scmp.lt.s32.totalorder %s19, 4
      %p275 = pnand %p273, %p274
      %p276 = pneg %p275
      // Predicated region
      $region37: #{tpu_custom_call.1} parent=5 // pred_check
        _
      $region38: #{tpu_custom_call.1} parent=5 // pred_check_branch
        %278 = sbr.rel (%p275) target = $region40
      $region39: #{tpu_custom_call.1} parent=5 // pred_region
        %s279 = ssub.s32 %s19, 1
        %s280 = sand.u32 %s48, 1
        %s281 = scalar_lea.sflag [#allocation6], %s280
        %s282 = sand.u32 %s48, 1
        %s283 = smul.addr %s282, 56
        %s284 = scalar_lea.vmem [#allocation5], %s283
        // Predicated region
        $region41: #{tpu_custom_call.1} parent=39 // pred_check
          %p285 = pneg %p61
        $region42: #{tpu_custom_call.1} parent=39 // pred_check_branch
          %287 = sbr.rel (%p285) target = $region44
        $region43: #{tpu_custom_call.1} parent=39 // pred_region
          %289 = dma.done %s281, 896
        $region44: #{tpu_custom_call.1} parent=39 // pred_fallthru
          _
        // Predicated region
        $region45: #{tpu_custom_call.1} parent=39 // pred_check
          %p290 = pneg %p82
        $region46: #{tpu_custom_call.1} parent=39 // pred_check_branch
          %292 = sbr.rel (%p290) target = $region48
        $region47: #{tpu_custom_call.1} parent=39 // pred_region
          %294 = dma.done [#allocation9], 6272
        $region48: #{tpu_custom_call.1} parent=39 // pred_fallthru
          _
        // Predicated region
        $region49: #{tpu_custom_call.1} parent=39 // pred_check
          %p295 = pneg %p103
        $region50: #{tpu_custom_call.1} parent=39 // pred_check_branch
          %297 = sbr.rel (%p295) target = $region52
        $region51: #{tpu_custom_call.1} parent=39 // pred_region
          %299 = dma.done [#allocation9], 128
        $region52: #{tpu_custom_call.1} parent=39 // pred_fallthru
          _
        // Predicated region
        $region53: #{tpu_custom_call.1} parent=39 // pred_check
          %p300 = pneg %p124
        $region54: #{tpu_custom_call.1} parent=39 // pred_check_branch
          %302 = sbr.rel (%p300) target = $region56
        $region55: #{tpu_custom_call.1} parent=39 // pred_region
          %304 = dma.done [#allocation12], 2048
        $region56: #{tpu_custom_call.1} parent=39 // pred_fallthru
          _
        // Predicated region
        $region57: #{tpu_custom_call.1} parent=39 // pred_check
          %p305 = pneg %p145
        $region58: #{tpu_custom_call.1} parent=39 // pred_check_branch
          %307 = sbr.rel (%p305) target = $region60
        $region59: #{tpu_custom_call.1} parent=39 // pred_region
          %309 = dma.done [#allocation12], 2048
        $region60: #{tpu_custom_call.1} parent=39 // pred_fallthru
          _
        %s310 = sand.u32 %s48, 1
        %s311 = scalar_lea.sflag [#allocation6], %s310
        %s312 = sand.u32 %s48, 1
        %s313 = smul.addr %s312, 56
        %s314 = scalar_lea.vmem [#allocation5], %s313
        %p315 = pneg %p61
        %p316 = pneg %p58
        %p317 = pneg %p82
        %p318 = pneg %p79
        %p319 = pneg %p103
        %p320 = pneg %p100
        %p321 = pneg %p124
        %p322 = pneg %p121
        %p323 = pneg %p145
        %p324 = pneg %p142
        %p325 = pneg %p175
        %p326 = pneg %p172
        %s327 = sand.u32 %s162, 1
        %s328 = scalar_lea.sflag [#allocation7], %s327
        %s329 = sand.u32 %s162, 1
        %s330 = smul.addr %s329, 16
        %s331 = scalar_lea.vmem [#allocation14], %s330
        %p332 = scmp.eq.s32.totalorder %s28, 0
        %s333 = scalar_select %p332, %s29, 0
        %s334 = smul.u32 2, %s333
        %p335 = scmp.eq.s32.totalorder %s28, 2
        %s336 = scalar_select %p335, %s29, 0
        %s337 = smul.u32 2, %s336
        %s339 = smul.u32 %s29, 16
        %p340 = scmp.eq.s32.totalorder %s28, 0
        %p341 = scmp.eq.s32.totalorder %s29, 0
        %p342 = pnand %p340, %p341
        %p343 = pneg %p342
        // Predicated region
        $region61: #{tpu_custom_call.1} parent=39 // pred_check
          _
        $region62: #{tpu_custom_call.1} parent=39 // pred_check_branch
          %345 = sbr.rel (%p342) target = $region64
        $region63: #{tpu_custom_call.1} parent=39 // pred_region
          %346 = vst [vmem:[#allocation4] sm:$0xf] 0.0
        $region64: #{tpu_custom_call.1} parent=39 // pred_fallthru
          _
        // Predicated region
        $region65: #{tpu_custom_call.1} parent=39 // pred_check
          %p347 = pneg %p340
        $region66: #{tpu_custom_call.1} parent=39 // pred_check_branch
          %349 = sbr.rel (%p347) target = $region68
        $region67: #{tpu_custom_call.1} parent=39 // pred_region
          %v350 = vld [vmem:[%s284] sm:$0xff]
          %v351 = vld [vmem:[%s284 + $0x8] sm:$0xff]
          %v352 = vld [vmem:[%s284 + $0x10] sm:$0xff]
          %v353 = vld [vmem:[%s284 + $0x18] sm:$0xf]
          %v354 = vld [vmem:[%s284 + $0x1c] sm:$0xff]
          %v355 = vld [vmem:[%s284 + $0x24] sm:$0xff]
          %v356 = vld [vmem:[%s284 + $0x2c] sm:$0xff]
          %v357 = vld [vmem:[%s284 + $0x34] sm:$0xf]
          %v358 = vld [vmem:[#allocation8] sm:$0xf]
          %v359 = vld [vmem:[#allocation8 + $0x4] sm:$0xf]
          %v360 = vld [vmem:[#allocation8 + $0x8] sm:$0xf]
          %v361 = vld [vmem:[#allocation8 + $0xc] sm:$0xf]
          %v362 = vld [vmem:[#allocation8 + $0x10] sm:$0xf]
          %v363 = vld [vmem:[#allocation8 + $0x14] sm:$0xf]
          %v364 = vld [vmem:[#allocation8 + $0x18] sm:$0xf]
          %v365 = vld [vmem:[#allocation8 + $0x1c] sm:$0xf]
          %v366 = vld [vmem:[#allocation8 + $0x20] sm:$0xf]
          %v367 = vld [vmem:[#allocation8 + $0x24] sm:$0xf]
          %v368 = vld [vmem:[#allocation8 + $0x28] sm:$0xf]
          %v369 = vld [vmem:[#allocation8 + $0x2c] sm:$0xf]
          %v370 = vld [vmem:[#allocation8 + $0x30] sm:$0xf]
          %v371 = vld [vmem:[#allocation8 + $0x34] sm:$0xf]
          %v372 = vld [vmem:[#allocation8 + $0x38] sm:$0xf]
          %v373 = vld [vmem:[#allocation8 + $0x3c] sm:$0xf]
          %v374 = vld [vmem:[#allocation8 + $0x40] sm:$0xf]
          %v375 = vld [vmem:[#allocation8 + $0x44] sm:$0xf]
          %v376 = vld [vmem:[#allocation8 + $0x48] sm:$0xf]
          %v377 = vld [vmem:[#allocation8 + $0x4c] sm:$0xf]
          %v378 = vld [vmem:[#allocation8 + $0x50] sm:$0xf]
          %v379 = vld [vmem:[#allocation8 + $0x54] sm:$0xf]
          %v380 = vld [vmem:[#allocation8 + $0x58] sm:$0xf]
          %v381 = vld [vmem:[#allocation8 + $0x5c] sm:$0xf]
          %v382 = vld [vmem:[#allocation8 + $0x60] sm:$0xf]
          %v383 = vld [vmem:[#allocation8 + $0x64] sm:$0xf]
          %v384 = vld [vmem:[#allocation8 + $0x68] sm:$0xf]
          %v385 = vld [vmem:[#allocation8 + $0x6c] sm:$0xf]
          %v386 = vld [vmem:[#allocation8 + $0x70] sm:$0xf]
          %v387 = vld [vmem:[#allocation8 + $0x74] sm:$0xf]
          %v388 = vld [vmem:[#allocation8 + $0x78] sm:$0xf]
          %v389 = vld [vmem:[#allocation8 + $0x7c] sm:$0xf]
          %v390 = vld [vmem:[#allocation8 + $0x80] sm:$0xf]
          %v391 = vld [vmem:[#allocation8 + $0x84] sm:$0xf]
          %v392 = vld [vmem:[#allocation8 + $0x88] sm:$0xf]
          %v393 = vld [vmem:[#allocation8 + $0x8c] sm:$0xf]
          %v394 = vld [vmem:[#allocation8 + $0x90] sm:$0xf]
          %v395 = vld [vmem:[#allocation8 + $0x94] sm:$0xf]
          %v396 = vld [vmem:[#allocation8 + $0x98] sm:$0xf]
          %v397 = vld [vmem:[#allocation8 + $0x9c] sm:$0xf]
          %v398 = vld [vmem:[#allocation8 + $0xa0] sm:$0xf]
          %v399 = vld [vmem:[#allocation8 + $0xa4] sm:$0xf]
          %v400 = vld [vmem:[#allocation8 + $0xa8] sm:$0xf]
          %v401 = vld [vmem:[#allocation8 + $0xac] sm:$0xf]
          %v402 = vld [vmem:[#allocation8 + $0xb0] sm:$0xf]
          %v403 = vld [vmem:[#allocation8 + $0xb4] sm:$0xf]
          %v404 = vld [vmem:[#allocation8 + $0xb8] sm:$0xf]
          %v405 = vld [vmem:[#allocation8 + $0xbc] sm:$0xf]
          %v406 = vld [vmem:[#allocation8 + $0xc0] sm:$0xf]
          %v407 = vld [vmem:[#allocation8 + $0xc4] sm:$0xf]
          %v408 = vld [vmem:[#allocation8 + $0xc8] sm:$0xf]
          %v409 = vld [vmem:[#allocation8 + $0xcc] sm:$0xf]
          %v410 = vld [vmem:[#allocation8 + $0xd0] sm:$0xf]
          %v411 = vld [vmem:[#allocation8 + $0xd4] sm:$0xf]
          %v412 = vld [vmem:[#allocation8 + $0xd8] sm:$0xf]
          %v413 = vld [vmem:[#allocation8 + $0xdc] sm:$0xf]
          %v414 = vld [vmem:[#allocation8 + $0xe0] sm:$0xf]
          %v415 = vld [vmem:[#allocation8 + $0xe4] sm:$0xf]
          %v416 = vld [vmem:[#allocation8 + $0xe8] sm:$0xf]
          %v417 = vld [vmem:[#allocation8 + $0xec] sm:$0xf]
          %v418 = vld [vmem:[#allocation8 + $0xf0] sm:$0xf]
          %v419 = vld [vmem:[#allocation8 + $0xf4] sm:$0xf]
          %v420 = vld [vmem:[#allocation8 + $0xf8] sm:$0xf]
          %v421 = vld [vmem:[#allocation8 + $0xfc] sm:$0xf]
          %v422 = vld [vmem:[#allocation8 + $0x100] sm:$0xf]
          %v423 = vld [vmem:[#allocation8 + $0x104] sm:$0xf]
          %v424 = vld [vmem:[#allocation8 + $0x108] sm:$0xf]
          %v425 = vld [vmem:[#allocation8 + $0x10c] sm:$0xf]
          %v426 = vld [vmem:[#allocation8 + $0x110] sm:$0xf]
          %v427 = vld [vmem:[#allocation8 + $0x114] sm:$0xf]
          %v428 = vld [vmem:[#allocation8 + $0x118] sm:$0xf]
          %v429 = vld [vmem:[#allocation8 + $0x11c] sm:$0xf]
          %v430 = vld [vmem:[#allocation8 + $0x120] sm:$0xf]
          %v431 = vld [vmem:[#allocation8 + $0x124] sm:$0xf]
          %v432 = vld [vmem:[#allocation8 + $0x128] sm:$0xf]
          %v433 = vld [vmem:[#allocation8 + $0x12c] sm:$0xf]
          %v434 = vld [vmem:[#allocation8 + $0x130] sm:$0xf]
          %v435 = vld [vmem:[#allocation8 + $0x134] sm:$0xf]
          %v436 = vld [vmem:[#allocation8 + $0x138] sm:$0xf]
          %v437 = vld [vmem:[#allocation8 + $0x13c] sm:$0xf]
          %v438 = vld [vmem:[#allocation8 + $0x140] sm:$0xf]
          %v439 = vld [vmem:[#allocation8 + $0x144] sm:$0xf]
          %v440 = vld [vmem:[#allocation8 + $0x148] sm:$0xf]
          %v441 = vld [vmem:[#allocation8 + $0x14c] sm:$0xf]
          %v442 = vld [vmem:[#allocation8 + $0x150] sm:$0xf]
          %v443 = vld [vmem:[#allocation8 + $0x154] sm:$0xf]
          %v444 = vld [vmem:[#allocation8 + $0x158] sm:$0xf]
          %v445 = vld [vmem:[#allocation8 + $0x15c] sm:$0xf]
          %v446 = vld [vmem:[#allocation8 + $0x160] sm:$0xf]
          %v447 = vld [vmem:[#allocation8 + $0x164] sm:$0xf]
          %v448 = vld [vmem:[#allocation8 + $0x168] sm:$0xf]
          %v449 = vld [vmem:[#allocation8 + $0x16c] sm:$0xf]
          %v450 = vld [vmem:[#allocation8 + $0x170] sm:$0xf]
          %v451 = vld [vmem:[#allocation8 + $0x174] sm:$0xf]
          %v452 = vld [vmem:[#allocation8 + $0x178] sm:$0xf]
          %v453 = vld [vmem:[#allocation8 + $0x17c] sm:$0xf]
          %v454 = vld [vmem:[#allocation8 + $0x180] sm:$0xf]
          %v455 = vld [vmem:[#allocation8 + $0x184] sm:$0xf]
          %v464 = vunpack.c.l.b16 %v350
          %v465 = vunpack.c.h.b16 %v350
          %v466 = vunpack.c.l.b16 %v351
          %v467 = vunpack.c.h.b16 %v351
          %v468 = vunpack.c.l.b16 %v352
          %v469 = vunpack.c.h.b16 %v352
          %v470 = vunpack.c.l.b16 %v353
          %v471 = vunpack.c.l.b16 %v354
          %v472 = vunpack.c.h.b16 %v354
          %v473 = vunpack.c.l.b16 %v355
          %v474 = vunpack.c.h.b16 %v355
          %v475 = vunpack.c.l.b16 %v356
          %v476 = vunpack.c.h.b16 %v356
          %v477 = vunpack.c.l.b16 %v357
          %v478 = vpack.c.b16 %v471, %v464
          %v479 = vpack.c.b16 %v472, %v465
          %v480 = vpack.c.b16 %v473, %v466
          %v481 = vpack.c.b16 %v474, %v467
          %v482 = vpack.c.b16 %v475, %v468
          %v483 = vpack.c.b16 %v476, %v469
          %v484 = vpack.c.b16 %v477, %v470
          %v589 = vunpack.c.l.b16 %v358
          %v590 = vunpack.c.l.b16 %v359
          %v591 = vunpack.c.l.b16 %v360
          %v592 = vunpack.c.l.b16 %v361
          %v593 = vunpack.c.l.b16 %v362
          %v594 = vunpack.c.l.b16 %v363
          %v595 = vunpack.c.l.b16 %v364
          %v596 = vunpack.c.l.b16 %v365
          %v597 = vunpack.c.l.b16 %v366
          %v598 = vunpack.c.l.b16 %v367
          %v599 = vunpack.c.l.b16 %v368
          %v600 = vunpack.c.l.b16 %v369
          %v601 = vunpack.c.l.b16 %v370
          %v602 = vunpack.c.l.b16 %v371
          %v603 = vunpack.c.l.b16 %v372
          %v604 = vunpack.c.l.b16 %v373
          %v605 = vunpack.c.l.b16 %v374
          %v606 = vunpack.c.l.b16 %v375
          %v607 = vunpack.c.l.b16 %v376
          %v608 = vunpack.c.l.b16 %v377
          %v609 = vunpack.c.l.b16 %v378
          %v610 = vunpack.c.l.b16 %v379
          %v611 = vunpack.c.l.b16 %v380
          %v612 = vunpack.c.l.b16 %v381
          %v613 = vunpack.c.l.b16 %v382
          %v614 = vunpack.c.l.b16 %v383
          %v615 = vunpack.c.l.b16 %v384
          %v616 = vunpack.c.l.b16 %v385
          %v617 = vunpack.c.l.b16 %v386
          %v618 = vunpack.c.l.b16 %v387
          %v619 = vunpack.c.l.b16 %v388
          %v620 = vunpack.c.l.b16 %v389
          %v621 = vunpack.c.l.b16 %v390
          %v622 = vunpack.c.l.b16 %v391
          %v623 = vunpack.c.l.b16 %v392
          %v624 = vunpack.c.l.b16 %v393
          %v625 = vunpack.c.l.b16 %v394
          %v626 = vunpack.c.l.b16 %v395
          %v627 = vunpack.c.l.b16 %v396
          %v628 = vunpack.c.l.b16 %v397
          %v629 = vunpack.c.l.b16 %v398
          %v630 = vunpack.c.l.b16 %v399
          %v631 = vunpack.c.l.b16 %v400
          %v632 = vunpack.c.l.b16 %v401
          %v633 = vunpack.c.l.b16 %v402
          %v634 = vunpack.c.l.b16 %v403
          %v635 = vunpack.c.l.b16 %v404
          %v636 = vunpack.c.l.b16 %v405
          %v637 = vunpack.c.l.b16 %v406
          %v638 = vunpack.c.l.b16 %v407
          %v639 = vunpack.c.l.b16 %v408
          %v640 = vunpack.c.l.b16 %v409
          %v641 = vunpack.c.l.b16 %v410
          %v642 = vunpack.c.l.b16 %v411
          %v643 = vunpack.c.l.b16 %v412
          %v644 = vunpack.c.l.b16 %v413
          %v645 = vunpack.c.l.b16 %v414
          %v646 = vunpack.c.l.b16 %v415
          %v647 = vunpack.c.l.b16 %v416
          %v648 = vunpack.c.l.b16 %v417
          %v649 = vunpack.c.l.b16 %v418
          %v650 = vunpack.c.l.b16 %v419
          %v651 = vunpack.c.l.b16 %v420
          %v652 = vunpack.c.l.b16 %v421
          %v653 = vunpack.c.l.b16 %v422
          %v654 = vunpack.c.l.b16 %v423
          %v655 = vunpack.c.l.b16 %v424
          %v656 = vunpack.c.l.b16 %v425
          %v657 = vunpack.c.l.b16 %v426
          %v658 = vunpack.c.l.b16 %v427
          %v659 = vunpack.c.l.b16 %v428
          %v660 = vunpack.c.l.b16 %v429
          %v661 = vunpack.c.l.b16 %v430
          %v662 = vunpack.c.l.b16 %v431
          %v663 = vunpack.c.l.b16 %v432
          %v664 = vunpack.c.l.b16 %v433
          %v665 = vunpack.c.l.b16 %v434
          %v666 = vunpack.c.l.b16 %v435
          %v667 = vunpack.c.l.b16 %v436
          %v668 = vunpack.c.l.b16 %v437
          %v669 = vunpack.c.l.b16 %v438
          %v670 = vunpack.c.l.b16 %v439
          %v671 = vunpack.c.l.b16 %v440
          %v672 = vunpack.c.l.b16 %v441
          %v673 = vunpack.c.l.b16 %v442
          %v674 = vunpack.c.l.b16 %v443
          %v675 = vunpack.c.l.b16 %v444
          %v676 = vunpack.c.l.b16 %v445
          %v677 = vunpack.c.l.b16 %v446
          %v678 = vunpack.c.l.b16 %v447
          %v679 = vunpack.c.l.b16 %v448
          %v680 = vunpack.c.l.b16 %v449
          %v681 = vunpack.c.l.b16 %v450
          %v682 = vunpack.c.l.b16 %v451
          %v683 = vunpack.c.l.b16 %v452
          %v684 = vunpack.c.l.b16 %v453
          %v685 = vunpack.c.l.b16 %v454
          %v686 = vunpack.c.l.b16 %v455
          %v687 = vpack.c.b16 %v590, %v589
          %v688 = vpack.c.b16 %v592, %v591
          %v689 = vpack.c.b16 %v594, %v593
          %v690 = vpack.c.b16 %v596, %v595
          %v691 = vpack.c.b16 %v598, %v597
          %v692 = vpack.c.b16 %v600, %v599
          %v693 = vpack.c.b16 %v602, %v601
          %v694 = vpack.c.b16 %v604, %v603
          %v695 = vpack.c.b16 %v606, %v605
          %v696 = vpack.c.b16 %v608, %v607
          %v697 = vpack.c.b16 %v610, %v609
          %v698 = vpack.c.b16 %v612, %v611
          %v699 = vpack.c.b16 %v614, %v613
          %v700 = vpack.c.b16 %v616, %v615
          %v701 = vpack.c.b16 %v618, %v617
          %v702 = vpack.c.b16 %v620, %v619
          %v703 = vpack.c.b16 %v622, %v621
          %v704 = vpack.c.b16 %v624, %v623
          %v705 = vpack.c.b16 %v626, %v625
          %v706 = vpack.c.b16 %v628, %v627
          %v707 = vpack.c.b16 %v630, %v629
          %v708 = vpack.c.b16 %v632, %v631
          %v709 = vpack.c.b16 %v634, %v633
          %v710 = vpack.c.b16 %v636, %v635
          %v711 = vpack.c.b16 %v638, %v637
          %v712 = vpack.c.b16 %v640, %v639
          %v713 = vpack.c.b16 %v642, %v641
          %v714 = vpack.c.b16 %v644, %v643
          %v715 = vpack.c.b16 %v646, %v645
          %v716 = vpack.c.b16 %v648, %v647
          %v717 = vpack.c.b16 %v650, %v649
          %v718 = vpack.c.b16 %v652, %v651
          %v719 = vpack.c.b16 %v654, %v653
          %v720 = vpack.c.b16 %v656, %v655
          %v721 = vpack.c.b16 %v658, %v657
          %v722 = vpack.c.b16 %v660, %v659
          %v723 = vpack.c.b16 %v662, %v661
          %v724 = vpack.c.b16 %v664, %v663
          %v725 = vpack.c.b16 %v666, %v665
          %v726 = vpack.c.b16 %v668, %v667
          %v727 = vpack.c.b16 %v670, %v669
          %v728 = vpack.c.b16 %v672, %v671
          %v729 = vpack.c.b16 %v674, %v673
          %v730 = vpack.c.b16 %v676, %v675
          %v731 = vpack.c.b16 %v678, %v677
          %v732 = vpack.c.b16 %v680, %v679
          %v733 = vpack.c.b16 %v682, %v681
          %v734 = vpack.c.b16 %v684, %v683
          %v735 = vpack.c.b16 %v686, %v685
          %vm785 = vcmask 130048
          %v787 = vsel %vm785, %v484, 0
          %789 = vmatpush.bf16.msra.mxu0 %v694
          %790 = vmatpush.bf16.msra.mxu0 %v693
          %791 = vmatpush.bf16.msra.mxu0 %v692
          %792 = vmatpush.bf16.msra.mxu0 %v691
          %793 = vmatpush.bf16.msra.mxu0 %v690
          %794 = vmatpush.bf16.msra.mxu0 %v689
          %795 = vmatpush.bf16.msra.mxu0 %v688
          %796 = vmatpush.bf16.msra.mxu0 %v687
          %797 = vmatmul.bf16.gmra.mxu0 %v478
          %v798 = vpop.f32.mrf.mxu0
          %v799 = vadd.f32 0.0, %v798
          %v800 = vpop.f32.mrf.mxu0
          %v801 = vadd.f32 0.0, %v800
          %802 = vdwg.mxu0
          %803 = vmatpush.bf16.msra.mxu0 %v702
          %804 = vmatpush.bf16.msra.mxu0 %v701
          %805 = vmatpush.bf16.msra.mxu0 %v700
          %806 = vmatpush.bf16.msra.mxu0 %v699
          %807 = vmatpush.bf16.msra.mxu0 %v698
          %808 = vmatpush.bf16.msra.mxu0 %v697
          %809 = vmatpush.bf16.msra.mxu0 %v696
          %810 = vmatpush.bf16.msra.mxu0 %v695
          %811 = vmatmul.bf16.gmra.mxu0 %v479
          %v812 = vpop.f32.mrf.mxu0
          %v813 = vadd.f32 %v799, %v812
          %v814 = vpop.f32.mrf.mxu0
          %v815 = vadd.f32 %v801, %v814
          %816 = vdwg.mxu0
          %817 = vmatpush.bf16.msra.mxu0 %v710
          %818 = vmatpush.bf16.msra.mxu0 %v709
          %819 = vmatpush.bf16.msra.mxu0 %v708
          %820 = vmatpush.bf16.msra.mxu0 %v707
          %821 = vmatpush.bf16.msra.mxu0 %v706
          %822 = vmatpush.bf16.msra.mxu0 %v705
          %823 = vmatpush.bf16.msra.mxu0 %v704
          %824 = vmatpush.bf16.msra.mxu0 %v703
          %825 = vmatmul.bf16.gmra.mxu0 %v480
          %v826 = vpop.f32.mrf.mxu0
          %v827 = vadd.f32 %v813, %v826
          %v828 = vpop.f32.mrf.mxu0
          %v829 = vadd.f32 %v815, %v828
          %830 = vdwg.mxu0
          %831 = vmatpush.bf16.msra.mxu0 %v718
          %832 = vmatpush.bf16.msra.mxu0 %v717
          %833 = vmatpush.bf16.msra.mxu0 %v716
          %834 = vmatpush.bf16.msra.mxu0 %v715
          %835 = vmatpush.bf16.msra.mxu0 %v714
          %836 = vmatpush.bf16.msra.mxu0 %v713
          %837 = vmatpush.bf16.msra.mxu0 %v712
          %838 = vmatpush.bf16.msra.mxu0 %v711
          %839 = vmatmul.bf16.gmra.mxu0 %v481
          %v840 = vpop.f32.mrf.mxu0
          %v841 = vadd.f32 %v827, %v840
          %v842 = vpop.f32.mrf.mxu0
          %v843 = vadd.f32 %v829, %v842
          %844 = vdwg.mxu0
          %845 = vmatpush.bf16.msra.mxu0 %v726
          %846 = vmatpush.bf16.msra.mxu0 %v725
          %847 = vmatpush.bf16.msra.mxu0 %v724
          %848 = vmatpush.bf16.msra.mxu0 %v723
          %849 = vmatpush.bf16.msra.mxu0 %v722
          %850 = vmatpush.bf16.msra.mxu0 %v721
          %851 = vmatpush.bf16.msra.mxu0 %v720
          %852 = vmatpush.bf16.msra.mxu0 %v719
          %853 = vmatmul.bf16.gmra.mxu0 %v482
          %v854 = vpop.f32.mrf.mxu0
          %v855 = vadd.f32 %v841, %v854
          %v856 = vpop.f32.mrf.mxu0
          %v857 = vadd.f32 %v843, %v856
          %858 = vdwg.mxu0
          %859 = vmatpush.bf16.msra.mxu0 %v734
          %860 = vmatpush.bf16.msra.mxu0 %v733
          %861 = vmatpush.bf16.msra.mxu0 %v732
          %862 = vmatpush.bf16.msra.mxu0 %v731
          %863 = vmatpush.bf16.msra.mxu0 %v730
          %864 = vmatpush.bf16.msra.mxu0 %v729
          %865 = vmatpush.bf16.msra.mxu0 %v728
          %866 = vmatpush.bf16.msra.mxu0 %v727
          %867 = vmatmul.bf16.gmra.mxu0 %v483
          %v868 = vpop.f32.mrf.mxu0
          %v869 = vadd.f32 %v855, %v868
          %v870 = vpop.f32.mrf.mxu0
          %v871 = vadd.f32 %v857, %v870
          %872 = vdwg.mxu0
          %873 = vmatpush.bf16.msra.mxu0 0
          %874 = vmatpush.bf16.msra.mxu0 0
          %875 = vmatpush.bf16.msra.mxu0 0
          %876 = vmatpush.bf16.msra.mxu0 0
          %877 = vmatpush.bf16.msra.mxu0 0
          %878 = vmatpush.bf16.msra.mxu0 0
          %879 = vmatpush.bf16.msra.mxu0 0
          %880 = vmatpush.bf16.msra.mxu0 %v735
          %881 = vmatmul.bf16.gmra.mxu0 %v787
          %v882 = vpop.f32.mrf.mxu0
          %v883 = vadd.f32 %v869, %v882
          %v884 = vpop.f32.mrf.mxu0
          %v885 = vadd.f32 %v871, %v884
          %886 = vdwg.mxu0
          %v887 = vld [vmem:[#allocation4] sm:$0x1]
          %v888 = vadd.f32 %v883, %v885
          %v889 = vrot.slane %v888, 4
          %v890 = vadd.f32 %v888, %v889
          %v891 = vrot.slane %v890, 2
          %v892 = vadd.f32 %v890, %v891
          %v893 = vrot.slane %v892, 1
          %v894 = vadd.f32 %v892, %v893
          %v895 = vadd.f32 %v887, %v894
          %896 = vst [vmem:[#allocation4] sm:$0x1] %v895
          %v897 = vld [vmem:[#allocation4 + $0x1] sm:$0x1]
          %v898 = vmul.f32 %v883, %v883
          %v899 = vmul.f32 %v885, %v885
          %v900 = vadd.f32 %v898, %v899
          %v901 = vrot.slane %v900, 4
          %v902 = vadd.f32 %v900, %v901
          %v903 = vrot.slane %v902, 2
          %v904 = vadd.f32 %v902, %v903
          %v905 = vrot.slane %v904, 1
          %v906 = vadd.f32 %v904, %v905
          %v907 = vadd.f32 %v897, %v906
          %908 = vst [vmem:[#allocation4 + $0x1] sm:$0x1] %v907
          %v909 = vpack.c.bf16 %v883, %v883
          %v910 = vpack.c.bf16 %v885, %v885
          %s911 = sshra.s32 %s339, 3
          %s912 = sand.u32 %s339, 7
          %s913 = smul.addr %s911, 4
          %s914 = scalar_lea.vmem [#allocation2], %s913
          %915 = vst [vmem:[%s914] sm:$0xf] %v909
          %916 = vst [vmem:[%s914 + $0x4] sm:$0xf] %v910
        $region68: #{tpu_custom_call.1} parent=39 // pred_fallthru
          _
        %p917 = scmp.eq.s32.totalorder %s28, 1
        // Predicated region
        $region69: #{tpu_custom_call.1} parent=39 // pred_check
          %p918 = pneg %p917
        $region70: #{tpu_custom_call.1} parent=39 // pred_check_branch
          %920 = sbr.rel (%p918) target = $region72
        $region71: #{tpu_custom_call.1} parent=39 // pred_region
          %v921 = vld [vmem:[#allocation10] sm:$0xff]
          %v922 = vld [vmem:[#allocation4] sm:$0x1]
          %v923 = vmul.f32 %v922, 0.125
          %v924 = vld [vmem:[#allocation4 + $0x1] sm:$0x1]
          %v925 = vmul.f32 %v924, 0.125
          %v926 = vmul.f32 %v923, %v923
          %v927 = vsub.f32 %v925, %v926
          %v928 = vmax.f32 %v927, 0.0
          %s929 = sshra.s32 %s339, 3
          %s930 = sand.u32 %s339, 7
          %s931 = smul.addr %s929, 4
          %s932 = scalar_lea.vmem [#allocation2], %s931
          %v933 = vld [vmem:[%s932] sm:$0xf]
          %v934 = vld [vmem:[%s932 + $0x4] sm:$0xf]
          %v935 = vunpack.c.l.bf16 %v933
          %v936 = vunpack.c.l.bf16 %v934
          %v937 = vperm.slane %v923, 0
          %v938 = vsub.f32 %v935, %v937
          %v939 = vsub.f32 %v936, %v937
          %v940 = vadd.f32 %v928, 1e-05
          %v941 = vrsqrt.pop %v940
          %v942 = vmul.f32 %v941, %v940
          %v943 = vmul.f32 %v942, %v941
          %v944 = vmul.f32 0.5, %v943
          %v945 = vsub.f32 1.5, %v944
          %v946 = vmul.f32 %v941, %v945
          %vm947 = vweird.f32 %v940
          %vm948 = vweird.f32 %v941
          %vm949 = vmor %vm947, %vm948
          %v950 = vsel %vm949, %v941, %v946
          %v951 = vperm.slane %v950, 0
          %v952 = vmul.f32 %v938, %v951
          %v953 = vmul.f32 %v939, %v951
          %v954 = vperm.slane %v921, 0
          %v955 = vmul.f32 %v952, %v954
          %v956 = vmul.f32 %v953, %v954
          %v957 = vperm.slane %v921, 1
          %v958 = vadd.f32 %v955, %v957
          %v959 = vadd.f32 %v956, %v957
          %v960 = vmax.f32 %v958, 0.0
          %v961 = vmax.f32 %v959, 0.0
          %v962 = vlaneseq
          %v963 = vshrl.u32 %v962, 7
          %v964 = vadd.s32 %v963, 8
          %v965 = vstv %s339
          %v966 = vadd.s32 %v963, %v965
          %v967 = vadd.s32 %v964, %v965
          %vm968 = vcmp.lt.s32.totalorder %v966, 8
          %vm969 = vcmp.lt.s32.totalorder %v967, 8
          %v970 = vsel %vm968, %v960, 0.0
          %v971 = vsel %vm969, %v961, 0.0
          %v972 = vld [vmem:[#allocation11] sm:$0xff]
          %v973 = vld [vmem:[#allocation11 + $0x8] sm:$0xff]
          %v974 = vld [vmem:[#allocation11 + $0x10] sm:$0xff]
          %v975 = vld [vmem:[#allocation11 + $0x18] sm:$0xff]
          %v976 = vld [vmem:[#allocation11 + $0x20] sm:$0xff]
          %v977 = vld [vmem:[#allocation11 + $0x28] sm:$0xff]
          %v978 = vld [vmem:[#allocation11 + $0x30] sm:$0xff]
          %v979 = vld [vmem:[#allocation11 + $0x38] sm:$0xff]
          %v980 = vld [vmem:[#allocation11 + $0x40] sm:$0xff]
          %v981 = vld [vmem:[#allocation11 + $0x48] sm:$0xff]
          %v982 = vld [vmem:[#allocation11 + $0x50] sm:$0xff]
          %v983 = vld [vmem:[#allocation11 + $0x58] sm:$0xff]
          %v984 = vld [vmem:[#allocation11 + $0x60] sm:$0xff]
          %v985 = vld [vmem:[#allocation11 + $0x68] sm:$0xff]
          %v986 = vld [vmem:[#allocation11 + $0x70] sm:$0xff]
          %v987 = vld [vmem:[#allocation11 + $0x78] sm:$0xff]
          %988 = vmatpush.msra.mxu0 %v987
          %989 = vmatpush.msra.mxu0 %v986
          %990 = vmatpush.msra.mxu0 %v985
          %991 = vmatpush.msra.mxu0 %v984
          %992 = vmatpush.msra.mxu0 %v983
          %993 = vmatpush.msra.mxu0 %v982
          %994 = vmatpush.msra.mxu0 %v981
          %995 = vmatpush.msra.mxu0 %v980
          %996 = vmatpush.msra.mxu0 %v979
          %997 = vmatpush.msra.mxu0 %v978
          %998 = vmatpush.msra.mxu0 %v977
          %999 = vmatpush.msra.mxu0 %v976
          %1000 = vmatpush.msra.mxu0 %v975
          %1001 = vmatpush.msra.mxu0 %v974
          %1002 = vmatpush.msra.mxu0 %v973
          %1003 = vmatpush.msra.mxu0 %v972
          %1004 = vmatmul.f32.gmra.mxu0 %v970
          %v1005 = vpop.f32.mrf.mxu0
          %v1006 = vadd.f32 0.0, %v1005
          %1007 = vmatmul.f32.gmra.mxu0 %v971
          %v1008 = vpop.f32.mrf.mxu0
          %v1009 = vadd.f32 0.0, %v1008
          %1010 = vdwg.mxu0
          %v1011 = vld [vmem:[#allocation4 + $0x2] sm:$0x1]
          %v1012 = vadd.f32 %v1006, %v1009
          %v1013 = vrot.slane %v1012, 4
          %v1014 = vadd.f32 %v1012, %v1013
          %v1015 = vrot.slane %v1014, 2
          %v1016 = vadd.f32 %v1014, %v1015
          %v1017 = vrot.slane %v1016, 1
          %v1018 = vadd.f32 %v1016, %v1017
          %v1019 = vadd.f32 %v1011, %v1018
          %1020 = vst [vmem:[#allocation4 + $0x2] sm:$0x1] %v1019
          %v1021 = vld [vmem:[#allocation4 + $0x3] sm:$0x1]
          %v1022 = vmul.f32 %v1006, %v1006
          %v1023 = vmul.f32 %v1009, %v1009
          %v1024 = vadd.f32 %v1022, %v1023
          %v1025 = vrot.slane %v1024, 4
          %v1026 = vadd.f32 %v1024, %v1025
          %v1027 = vrot.slane %v1026, 2
          %v1028 = vadd.f32 %v1026, %v1027
          %v1029 = vrot.slane %v1028, 1
          %v1030 = vadd.f32 %v1028, %v1029
          %v1031 = vadd.f32 %v1021, %v1030
          %1032 = vst [vmem:[#allocation4 + $0x3] sm:$0x1] %v1031
          %v1033 = vpack.c.bf16 %v1006, %v1006
          %v1034 = vpack.c.bf16 %v1009, %v1009
          %s1035 = smul.addr %s929, 4
          %s1036 = scalar_lea.vmem [#allocation3], %s1035
          %1037 = vst [vmem:[%s1036] sm:$0xf] %v1033
          %1038 = vst [vmem:[%s1036 + $0x4] sm:$0xf] %v1034
        $region72: #{tpu_custom_call.1} parent=39 // pred_fallthru
          _
        %p1039 = scmp.eq.s32.totalorder %s28, 2
        // Predicated region
        $region73: #{tpu_custom_call.1} parent=39 // pred_check
          %p1040 = pneg %p1039
        $region74: #{tpu_custom_call.1} parent=39 // pred_check_branch
          %1042 = sbr.rel (%p1040) target = $region76
        $region75: #{tpu_custom_call.1} parent=39 // pred_region
          %v1043 = vld [vmem:[#allocation10] sm:$0xff]
          %v1044 = vld [vmem:[#allocation4 + $0x2] sm:$0x1]
          %v1045 = vmul.f32 %v1044, 0.125
          %v1046 = vld [vmem:[#allocation4 + $0x3] sm:$0x1]
          %v1047 = vmul.f32 %v1046, 0.125
          %v1048 = vmul.f32 %v1045, %v1045
          %v1049 = vsub.f32 %v1047, %v1048
          %v1050 = vmax.f32 %v1049, 0.0
          %s1051 = sshra.s32 %s339, 3
          %s1052 = sand.u32 %s339, 7
          %s1053 = smul.addr %s1051, 4
          %s1054 = scalar_lea.vmem [#allocation3], %s1053
          %v1055 = vld [vmem:[%s1054] sm:$0xf]
          %v1056 = vld [vmem:[%s1054 + $0x4] sm:$0xf]
          %v1057 = vunpack.c.l.bf16 %v1055
          %v1058 = vunpack.c.l.bf16 %v1056
          %v1059 = vperm.slane %v1045, 0
          %v1060 = vsub.f32 %v1057, %v1059
          %v1061 = vsub.f32 %v1058, %v1059
          %v1062 = vadd.f32 %v1050, 1e-05
          %v1063 = vrsqrt.pop %v1062
          %v1064 = vmul.f32 %v1063, %v1062
          %v1065 = vmul.f32 %v1064, %v1063
          %v1066 = vmul.f32 0.5, %v1065
          %v1067 = vsub.f32 1.5, %v1066
          %v1068 = vmul.f32 %v1063, %v1067
          %vm1069 = vweird.f32 %v1062
          %vm1070 = vweird.f32 %v1063
          %vm1071 = vmor %vm1069, %vm1070
          %v1072 = vsel %vm1071, %v1063, %v1068
          %v1073 = vperm.slane %v1072, 0
          %v1074 = vmul.f32 %v1060, %v1073
          %v1075 = vmul.f32 %v1061, %v1073
          %v1076 = vperm.slane %v1043, 2
          %v1077 = vmul.f32 %v1074, %v1076
          %v1078 = vmul.f32 %v1075, %v1076
          %v1079 = vperm.slane %v1043, 3
          %v1080 = vadd.f32 %v1077, %v1079
          %v1081 = vadd.f32 %v1078, %v1079
          %v1082 = vmax.f32 %v1080, 0.0
          %v1083 = vmax.f32 %v1081, 0.0
          %v1084 = vld [vmem:[#allocation13] sm:$0xff]
          %v1085 = vld [vmem:[#allocation13 + $0x8] sm:$0xff]
          %v1086 = vld [vmem:[#allocation13 + $0x10] sm:$0xff]
          %v1087 = vld [vmem:[#allocation13 + $0x18] sm:$0xff]
          %v1088 = vld [vmem:[#allocation13 + $0x20] sm:$0xff]
          %v1089 = vld [vmem:[#allocation13 + $0x28] sm:$0xff]
          %v1090 = vld [vmem:[#allocation13 + $0x30] sm:$0xff]
          %v1091 = vld [vmem:[#allocation13 + $0x38] sm:$0xff]
          %v1092 = vld [vmem:[#allocation13 + $0x40] sm:$0xff]
          %v1093 = vld [vmem:[#allocation13 + $0x48] sm:$0xff]
          %v1094 = vld [vmem:[#allocation13 + $0x50] sm:$0xff]
          %v1095 = vld [vmem:[#allocation13 + $0x58] sm:$0xff]
          %v1096 = vld [vmem:[#allocation13 + $0x60] sm:$0xff]
          %v1097 = vld [vmem:[#allocation13 + $0x68] sm:$0xff]
          %v1098 = vld [vmem:[#allocation13 + $0x70] sm:$0xff]
          %v1099 = vld [vmem:[#allocation13 + $0x78] sm:$0xff]
          %v1100 = vperm.slane %v1043, 4
          %1101 = vmatpush.msra.mxu0 %v1099
          %1102 = vmatpush.msra.mxu0 %v1098
          %1103 = vmatpush.msra.mxu0 %v1097
          %1104 = vmatpush.msra.mxu0 %v1096
          %1105 = vmatpush.msra.mxu0 %v1095
          %1106 = vmatpush.msra.mxu0 %v1094
          %1107 = vmatpush.msra.mxu0 %v1093
          %1108 = vmatpush.msra.mxu0 %v1092
          %1109 = vmatpush.msra.mxu0 %v1091
          %1110 = vmatpush.msra.mxu0 %v1090
          %1111 = vmatpush.msra.mxu0 %v1089
          %1112 = vmatpush.msra.mxu0 %v1088
          %1113 = vmatpush.msra.mxu0 %v1087
          %1114 = vmatpush.msra.mxu0 %v1086
          %1115 = vmatpush.msra.mxu0 %v1085
          %1116 = vmatpush.msra.mxu0 %v1084
          %1117 = vmatmul.f32.gmra.mxu0 %v1082
          %v1118 = vpop.f32.mrf.mxu0
          %v1119 = vadd.f32 %v1100, %v1118
          %1120 = vmatmul.f32.gmra.mxu0 %v1083
          %v1121 = vpop.f32.mrf.mxu0
          %v1122 = vadd.f32 %v1100, %v1121
          %1123 = vdwg.mxu0
          %1124 = vst [vmem:[%s331] sm:$0xff] %v1119
          %1125 = vst [vmem:[%s331 + $0x8] sm:$0xff] %v1122
        $region76: #{tpu_custom_call.1} parent=39 // pred_fallthru
          _
        %s1126 = sand.u32 %s162, 1
        %s1127 = scalar_lea.sflag [#allocation7], %s1126
        %s1128 = sand.u32 %s162, 1
        %s1129 = smul.addr %s1128, 16
        %s1130 = scalar_lea.vmem [#allocation14], %s1129
        // Predicated region
        $region77: #{tpu_custom_call.1} parent=39 // pred_check
          %p1131 = pneg %p172
        $region78: #{tpu_custom_call.1} parent=39 // pred_check_branch
          %1133 = sbr.rel (%p1131) target = $region80
        $region79: #{tpu_custom_call.1} parent=39 // pred_region
          %p1134 = scmp.eq.s32.totalorder %s28, 2
          %s1135 = scalar_select %p1134, %s29, 0
          %s1136 = smul.u32 2, %s1135
          %1138 = vsyncadd %s1127, 0
          %s1139 = smul.addr %s1136, 8
          %s1140 = scalar_lea.hbm %s5, %s1139
          %s1141 = sshll.u32 %s1130, 4
          %s1142 = int_to_ptr.vmem [resolvable:$true] %s1141
          %s1143 = sshll.u32 %s1140, 4
          %s1144 = int_to_ptr.hbm [resolvable:$true] %s1143
          %1149 = dma.vmem_to_hbm [thread:$0]  %s1142, 256, %s1144, %s1127, 128, 128, 8
        $region80: #{tpu_custom_call.1} parent=39 // pred_fallthru
          _
      $region40: #{tpu_custom_call.1} parent=5 // pred_fallthru
        _
      %p1150 = scmp.le.s32.totalorder 2, %s19
      // Predicated region
      $region81: #{tpu_custom_call.1} parent=5 // pred_check
        %p1151 = pneg %p1150
      $region82: #{tpu_custom_call.1} parent=5 // pred_check_branch
        %1153 = sbr.rel (%p1151) target = $region84
      $region83: #{tpu_custom_call.1} parent=5 // pred_region
        %s1154 = ssub.s32 %s19, 2
        // Predicated region
        $region85: #{tpu_custom_call.1} parent=83 // pred_check
          %p1155 = pneg %p178
        $region86: #{tpu_custom_call.1} parent=83 // pred_check_branch
          %1157 = sbr.rel (%p1155) target = $region88
        $region87: #{tpu_custom_call.1} parent=83 // pred_region
          %s1158 = sand.u32 %s163, 1
          %s1159 = scalar_lea.sflag [#allocation7], %s1158
          %s1160 = sand.u32 %s163, 1
          %s1161 = smul.addr %s1160, 16
          %s1162 = scalar_lea.vmem [#allocation14], %s1161
          %1164 = dma.done %s1159, 256
        $region88: #{tpu_custom_call.1} parent=83 // pred_fallthru
          _
      $region84: #{tpu_custom_call.1} parent=5 // pred_fallthru
        _
    $region6: #{tpu_custom_call.1} parent=1 // loop_footer
      %s23 = sadd.s32 1, %s19
    $region7: #{tpu_custom_call.1} parent=1 // loop_footer_branch
      %18 = sbr.rel target = $region3
    $region8: #{tpu_custom_call.1} parent=1 // loop_exit
      _
    %1165 = vsyncpa [#allocation6], 1
    %s1166 = scalar_lea.sflag [#allocation6], 1
    %1167 = vsyncpa %s1166, 1
    %1168 = vsyncpa [#allocation9], 1
    %1169 = vsyncpa [#allocation12], 1
    %1170 = vsyncpa [#allocation7], 1
    %s1171 = scalar_lea.sflag [#allocation7], 1
    %1172 = vsyncpa %s1171, 1

</llo_original>
